<compile_context>
chip_gen: v5e
topology: v5e:2x2
jax: 0.10.0
libtpu: 0.0.40
codegen_flags: <defaults>
</compile_context>

<pallas_src>
import jax
import jax.numpy as jnp
from jax.experimental import pallas as pl
from jax.experimental.pallas import tpu as pltpu


def _round_up(a, b):
    return (a + b - 1) // b * b


def _subgraph_gnn_kernel(y_ref, h0_ref, hop1_ref, hop2_ref, hop3_ref,
                         b1_ref, w2_ref, b2_ref, o_ref, acc_ref):
    k = pl.program_id(1)
    last_k = pl.num_programs(1) - 1
    TM = acc_ref.shape[0]
    H1 = h0_ref.shape[1]

    # Fold the branch-0 (identity-hop) contribution into the accumulator at
    # the start of the reduction; branches 1..3 start at zero.
    @pl.when(k == 0)
    def _init():
        acc_ref[...] = jnp.concatenate(
            [h0_ref[...], jnp.zeros((TM, 3 * H1), jnp.float32)], axis=1)

    # Branches 1..3: acc[:, (j+1)*H1:(j+2)*H1] += hop_j @ (X @ W1[j+1]).
    # Hop tiles arrive as int8 (0/1) and are upcast to bf16 for the MXU.
    dots = [
        jnp.dot(hop_ref[...].astype(jnp.bfloat16), y_ref[j],
                preferred_element_type=jnp.float32)
        for j, hop_ref in enumerate((hop1_ref, hop2_ref, hop3_ref))
    ]
    acc_ref[...] += jnp.concatenate(
        [jnp.zeros((TM, H1), jnp.float32)] + dots, axis=1)

    # Epilogue only after the full reduction over N (ReLU is nonlinear).
    @pl.when(k == last_k)
    def _epilogue():
        h = jnp.maximum(acc_ref[...] + b1_ref[...], 0.0)       # [TM, 4*H1]
        out = jnp.dot(h, w2_ref[...],
                      preferred_element_type=jnp.float32) + b2_ref[...]
        o_ref[...] = out.astype(o_ref.dtype)


def subgraph_gnn(x, walk_feats, hop1, hop2, hop3, params, use_rw=True,
                 block_m=None, block_k=None):
    """Pallas implementation of Subgraph_GNN.forward."""
    X = jnp.concatenate([x, walk_feats], axis=1) if use_rw else x
    X = X.astype(jnp.float32)
    w1, b1, w2, b2 = params            # [4,I,H1], [4,1,H1], [4,H1,H2], [4,1,H2]
    N = X.shape[0]
    H1 = w1.shape[-1]
    H2 = w2.shape[-1]
    H2p = _round_up(H2, 128)           # lane-dense output store

    # Tile heuristic: big streamed int8 hop tiles; fits default scoped VMEM on
    # every generation (3 hops x 2 bufs x 512*1024 int8 = 3 MiB + small rest).
    TM = block_m if block_m is not None else min(512, _round_up(N, 128))
    TK = block_k if block_k is not None else min(1024, _round_up(N, 128))
    assert TM % 32 == 0, "int8 hop tiles need TM % 32 == 0"
    assert TK % 128 == 0, "hop tiles need TK % 128 == 0"

    # Independent row / column padding (hop traffic scales with Np_r * Np_c).
    Np_r = _round_up(N, TM)
    Np_c = _round_up(N, TK)

    # Quantize hops to int8 (0/1 values are exact) BEFORE padding.
    hops = [jnp.pad(h.astype(jnp.int8), ((0, Np_r - N), (0, Np_c - N)))
            for h in (hop1, hop2, hop3)]

    w1 = w1.astype(jnp.float32); b1 = b1.astype(jnp.float32)
    w2 = w2.astype(jnp.float32); b2 = b2.astype(jnp.float32)

    # Hoist X @ W1 out of the kernel (plain XLA, tiny).
    Xc = jnp.pad(X, ((0, Np_c - N), (0, 0)))
    Xr = jnp.pad(X, ((0, Np_r - N), (0, 0)))
    Y = jnp.einsum('ni,jih->jnh', Xc, w1[1:4]).astype(jnp.bfloat16)  # [3,Npc,H1]
    H0 = jnp.dot(Xr, w1[0])                                          # [Npr,H1]

    b1c = b1.reshape(1, 4 * H1)                                       # branch 0..3
    w2c = jnp.pad(w2, ((0, 0), (0, 0), (0, H2p - H2))).reshape(4 * H1, H2p)
    b2s = jnp.pad(jnp.sum(b2, axis=0), ((0, 0), (0, H2p - H2)))       # [1, H2p]

    grid = (Np_r // TM, Np_c // TK)
    const2 = lambda i, k: (0, 0)
    hop_spec = lambda: pl.BlockSpec((TM, TK), lambda i, k: (i, k))

    out = pl.pallas_call(
        _subgraph_gnn_kernel,
        out_shape=jax.ShapeDtypeStruct((Np_r, H2p), jnp.float32),
        grid_spec=pltpu.PrefetchScalarGridSpec(
            num_scalar_prefetch=0,
            grid=grid,
            in_specs=[
                pl.BlockSpec((3, TK, H1), lambda i, k: (0, k, 0)),   # Y (bf16)
                pl.BlockSpec((TM, H1), lambda i, k: (i, 0)),         # H0 (f32)
                hop_spec(), hop_spec(), hop_spec(),                  # hops int8
                pl.BlockSpec((1, 4 * H1), const2),                   # b1 concat
                pl.BlockSpec((4 * H1, H2p), const2),                 # W2 stacked
                pl.BlockSpec((1, H2p), const2),                      # sum(b2)
            ],
            out_specs=pl.BlockSpec((TM, H2p), lambda i, k: (i, 0)),
            scratch_shapes=[pltpu.VMEM((TM, 4 * H1), jnp.float32)],
        ),
        compiler_params=pltpu.CompilerParams(
            dimension_semantics=("parallel", "arbitrary")),
    )(Y, H0, hops[0], hops[1], hops[2], b1c, w2c, b2s)

    return out[:N, :H2]


def init_params(key, in_dim, h1, h2):
    """Deterministic per-branch params (PyTorch default Linear init style)."""
    ks = jax.random.split(key, 4)
    bound1 = 1.0 / jnp.sqrt(in_dim)
    bound2 = 1.0 / jnp.sqrt(h1)
    w1 = jax.random.uniform(ks[0], (4, in_dim, h1), jnp.float32, -bound1, bound1)
    b1 = jax.random.uniform(ks[1], (4, 1, h1), jnp.float32, -bound1, bound1)
    w2 = jax.random.uniform(ks[2], (4, h1, h2), jnp.float32, -bound2, bound2)
    b2 = jax.random.uniform(ks[3], (4, 1, h2), jnp.float32, -bound2, bound2)
    return (w1, b1, w2, b2)


if __name__ == "__main__":
    # small shapes: N nodes, raw feats + random-walk feats concat to in_dim
    N, d_x, d_w = 16, 5, 3
    in_dim = d_x + d_w
    hidden1, hidden2 = 32, 16

    key = jax.random.PRNGKey(0)
    k_x, k_w, k_h1, k_h2, k_h3, k_p = jax.random.split(key, 6)

    x = jax.random.normal(k_x, (N, d_x), jnp.float32)
    walk_feats = jax.random.normal(k_w, (N, d_w), jnp.float32)
    hop1 = (jax.random.uniform(k_h1, (N, N)) > 0.7).astype(jnp.float32)
    hop2 = (jax.random.uniform(k_h2, (N, N)) > 0.7).astype(jnp.float32)
    hop3 = (jax.random.uniform(k_h3, (N, N)) > 0.7).astype(jnp.float32)
    params = init_params(k_p, in_dim, hidden1, hidden2)

    fn = jax.jit(subgraph_gnn,
                 static_argnames=("use_rw", "block_m", "block_k"))

    # pure-JAX f32 reference (matches the PyTorch module)
    w1, b1, w2, b2 = params

    def ref_mlp(z, i):
        return jnp.maximum(z @ w1[i] + b1[i], 0.0) @ w2[i] + b2[i]

    def ref_fwd(xx, wf, h1_, h2_, h3_):
        Xr = jnp.concatenate([xx, wf], axis=1)
        return (ref_mlp(Xr, 0) + ref_mlp(h1_ @ Xr, 1)
                + ref_mlp(h2_ @ Xr, 2) + ref_mlp(h3_ @ Xr, 3))

    def rel_err(a, b):
        return float(jnp.linalg.norm(a - b) / (jnp.linalg.norm(b) + 1e-12))

    # Case 1: toy size (single tile, exercises padding N=16 -> 128).
    out = fn(x, walk_feats, hop1, hop2, hop3, params, use_rw=True)
    jax.block_until_ready(out)
    ref = ref_fwd(x, walk_feats, hop1, hop2, hop3)
    assert out.shape == (N, hidden2)
    assert rel_err(out, ref) < 2e-2, rel_err(out, ref)

    # Case 2: multi-tile grid + K-accumulator path at still-small shapes.
    N2 = 272
    k2 = jax.random.split(jax.random.PRNGKey(1), 5)
    x2 = jax.random.normal(k2[0], (N2, d_x), jnp.float32)
    wf2 = jax.random.normal(k2[1], (N2, d_w), jnp.float32)
    h1b = (jax.random.uniform(k2[2], (N2, N2)) > 0.8).astype(jnp.float32)
    h2b = (jax.random.uniform(k2[3], (N2, N2)) > 0.8).astype(jnp.float32)
    h3b = (jax.random.uniform(k2[4], (N2, N2)) > 0.8).astype(jnp.float32)
    out2 = fn(x2, wf2, h1b, h2b, h3b, params, use_rw=True,
              block_m=128, block_k=128)
    jax.block_until_ready(out2)
    ref2 = ref_fwd(x2, wf2, h1b, h2b, h3b)
    assert out2.shape == (N2, hidden2)
    assert rel_err(out2, ref2) < 2e-2, rel_err(out2, ref2)

    print("KERNEL_OK")
</pallas_src>

<mosaic_0001>
module attributes {stable_mosaic.version = 11 : i64} {
  func.func @_subgraph_gnn_kernel(%arg0: i32, %arg1: i32, %arg2: memref<3x128x32xbf16, #tpu.memory_space<vmem>>, %arg3: memref<128x32xf32, #tpu.memory_space<vmem>>, %arg4: memref<128x128xi8, #tpu.memory_space<vmem>>, %arg5: memref<128x128xi8, #tpu.memory_space<vmem>>, %arg6: memref<128x128xi8, #tpu.memory_space<vmem>>, %arg7: memref<1x128xf32, #tpu.memory_space<vmem>>, %arg8: memref<128x128xf32, #tpu.memory_space<vmem>>, %arg9: memref<1x128xf32, #tpu.memory_space<vmem>>, %arg10: memref<128x128xf32, #tpu.memory_space<vmem>>, %arg11: memref<128x128xf32, #tpu.memory_space<vmem>>) attributes {dimension_semantics = [#tpu.dimension_semantics<parallel>, #tpu.dimension_semantics<arbitrary>], iteration_bounds = array<i64: 1, 1>, scalar_prefetch = 0 : i64, scratch_operands = 1 : i64, tpu.core_type = #tpu.core_type<tc>, window_params = [{transform_indices = @transform_0, window_bounds = array<i64: 3, 128, 32>}, {transform_indices = @transform_1, window_bounds = array<i64: 128, 32>}, {transform_indices = @transform_2, window_bounds = array<i64: 128, 128>}, {transform_indices = @transform_3, window_bounds = array<i64: 128, 128>}, {transform_indices = @transform_4, window_bounds = array<i64: 128, 128>}, {pipeline_mode = #tpu.pipeline_mode<synchronous>, transform_indices = @transform_5, window_bounds = array<i64: 1, 128>}, {pipeline_mode = #tpu.pipeline_mode<synchronous>, transform_indices = @transform_6, window_bounds = array<i64: 128, 128>}, {pipeline_mode = #tpu.pipeline_mode<synchronous>, transform_indices = @transform_7, window_bounds = array<i64: 1, 128>}, {transform_indices = @transform_8, window_bounds = array<i64: 128, 128>}]} {
    %c0_i32 = arith.constant 0 : i32
    %0 = arith.cmpi eq, %arg1, %c0_i32 : i32
    %1 = arith.extui %0 : i1 to i32
    %c0_i32_0 = arith.constant 0 : i32
    %2 = arith.cmpi ne, %1, %c0_i32_0 : i32
    scf.if %2 {
      %c0_22 = arith.constant 0 : index
      %c0_23 = arith.constant 0 : index
      %26 = vector.load %arg3[%c0_22, %c0_23] : memref<128x32xf32, #tpu.memory_space<vmem>>, vector<128x32xf32>
      %cst_24 = arith.constant 0.000000e+00 : f32
      %27 = vector.broadcast %cst_24 : f32 to vector<128x96xf32>
      %28 = tpu.concatenate %26, %27 in 1 : vector<128x32xf32>, vector<128x96xf32> -> vector<128x128xf32>
      %c0_25 = arith.constant 0 : index
      %c0_26 = arith.constant 0 : index
      %29 = vector.load %arg11[%c0_25, %c0_26] : memref<128x128xf32, #tpu.memory_space<vmem>>, vector<128x128xf32>
      tpu.vector_store %arg11[%c0_25, %c0_26], %28 {strides = array<i32>} : memref<128x128xf32, #tpu.memory_space<vmem>>, vector<128x128xf32>,
    } else {
    }
    %c0 = arith.constant 0 : index
    %c0_1 = arith.constant 0 : index
    %3 = vector.load %arg4[%c0, %c0_1] : memref<128x128xi8, #tpu.memory_space<vmem>>, vector<128x128xi8>
    %4 = arith.sitofp %3 : vector<128x128xi8> to vector<128x128xbf16>
    %c0_2 = arith.constant 0 : index
    %c0_3 = arith.constant 0 : index
    %c0_4 = arith.constant 0 : index
    %5 = vector.load %arg2[%c0_2, %c0_3, %c0_4] : memref<3x128x32xbf16, #tpu.memory_space<vmem>>, vector<1x128x32xbf16>
    %6 = vector.shape_cast %5 : vector<1x128x32xbf16> to vector<128x32xbf16>
    %cst = arith.constant dense<0.000000e+00> : vector<128x32xf32>
    %7 = tpu.matmul %4, %6, %cst {dimension_numbers = #tpu.dot_dimension_numbers<[1], [0], [0], [1], [0, 0, 1, 1], [], []>} : vector<128x128xbf16>, vector<128x32xbf16>, vector<128x32xf32> -> vector<128x32xf32>
    %c0_5 = arith.constant 0 : index
    %c0_6 = arith.constant 0 : index
    %8 = vector.load %arg5[%c0_5, %c0_6] : memref<128x128xi8, #tpu.memory_space<vmem>>, vector<128x128xi8>
    %9 = arith.sitofp %8 : vector<128x128xi8> to vector<128x128xbf16>
    %c1 = arith.constant 1 : index
    %c0_7 = arith.constant 0 : index
    %c0_8 = arith.constant 0 : index
    %10 = vector.load %arg2[%c1, %c0_7, %c0_8] : memref<3x128x32xbf16, #tpu.memory_space<vmem>>, vector<1x128x32xbf16>
    %11 = vector.shape_cast %10 : vector<1x128x32xbf16> to vector<128x32xbf16>
    %cst_9 = arith.constant dense<0.000000e+00> : vector<128x32xf32>
    %12 = tpu.matmul %9, %11, %cst_9 {dimension_numbers = #tpu.dot_dimension_numbers<[1], [0], [0], [1], [0, 0, 1, 1], [], []>} : vector<128x128xbf16>, vector<128x32xbf16>, vector<128x32xf32> -> vector<128x32xf32>
    %c0_10 = arith.constant 0 : index
    %c0_11 = arith.constant 0 : index
    %13 = vector.load %arg6[%c0_10, %c0_11] : memref<128x128xi8, #tpu.memory_space<vmem>>, vector<128x128xi8>
    %14 = arith.sitofp %13 : vector<128x128xi8> to vector<128x128xbf16>
    %c2 = arith.constant 2 : index
    %c0_12 = arith.constant 0 : index
    %c0_13 = arith.constant 0 : index
    %15 = vector.load %arg2[%c2, %c0_12, %c0_13] : memref<3x128x32xbf16, #tpu.memory_space<vmem>>, vector<1x128x32xbf16>
    %16 = vector.shape_cast %15 : vector<1x128x32xbf16> to vector<128x32xbf16>
    %cst_14 = arith.constant dense<0.000000e+00> : vector<128x32xf32>
    %17 = tpu.matmul %14, %16, %cst_14 {dimension_numbers = #tpu.dot_dimension_numbers<[1], [0], [0], [1], [0, 0, 1, 1], [], []>} : vector<128x128xbf16>, vector<128x32xbf16>, vector<128x32xf32> -> vector<128x32xf32>
    %c0_15 = arith.constant 0 : index
    %c0_16 = arith.constant 0 : index
    %18 = vector.load %arg11[%c0_15, %c0_16] : memref<128x128xf32, #tpu.memory_space<vmem>>, vector<128x128xf32>
    %cst_17 = arith.constant 0.000000e+00 : f32
    %19 = vector.broadcast %cst_17 : f32 to vector<128x32xf32>
    %20 = tpu.concatenate %19, %7, %12, %17 in 1 : vector<128x32xf32>, vector<128x32xf32>, vector<128x32xf32>, vector<128x32xf32> -> vector<128x128xf32>
    %21 = arith.addf %18, %20 : vector<128x128xf32>
    %c0_18 = arith.constant 0 : index
    %c0_19 = arith.constant 0 : index
    %22 = vector.load %arg11[%c0_18, %c0_19] : memref<128x128xf32, #tpu.memory_space<vmem>>, vector<128x128xf32>
    tpu.vector_store %arg11[%c0_18, %c0_19], %21 {strides = array<i32>} : memref<128x128xf32, #tpu.memory_space<vmem>>, vector<128x128xf32>,
    %c0_i32_20 = arith.constant 0 : i32
    %23 = arith.cmpi eq, %arg1, %c0_i32_20 : i32
    %24 = arith.extui %23 : i1 to i32
    %c0_i32_21 = arith.constant 0 : i32
    %25 = arith.cmpi ne, %24, %c0_i32_21 : i32
    scf.if %25 {
      %c0_22 = arith.constant 0 : index
      %c0_23 = arith.constant 0 : index
      %26 = vector.load %arg11[%c0_22, %c0_23] : memref<128x128xf32, #tpu.memory_space<vmem>>, vector<128x128xf32>
      %c0_24 = arith.constant 0 : index
      %c0_25 = arith.constant 0 : index
      %27 = vector.load %arg7[%c0_24, %c0_25] : memref<1x128xf32, #tpu.memory_space<vmem>>, vector<1x128xf32>
      %28 = vector.broadcast %27 : vector<1x128xf32> to vector<128x128xf32>
      %29 = arith.addf %26, %28 : vector<128x128xf32>
      %cst_26 = arith.constant 0.000000e+00 : f32
      %30 = vector.broadcast %cst_26 : f32 to vector<128x128xf32>
      %31 = arith.maximumf %29, %30 : vector<128x128xf32>
      %c0_27 = arith.constant 0 : index
      %c0_28 = arith.constant 0 : index
      %32 = vector.load %arg8[%c0_27, %c0_28] : memref<128x128xf32, #tpu.memory_space<vmem>>, vector<128x128xf32>
      %cst_29 = arith.constant dense<0.000000e+00> : vector<128x128xf32>
      %33 = tpu.matmul %31, %32, %cst_29 {dimension_numbers = #tpu.dot_dimension_numbers<[1], [0], [0], [1], [0, 0, 1, 1], [], []>} : vector<128x128xf32>, vector<128x128xf32>, vector<128x128xf32> -> vector<128x128xf32>
      %c0_30 = arith.constant 0 : index
      %c0_31 = arith.constant 0 : index
      %34 = vector.load %arg9[%c0_30, %c0_31] : memref<1x128xf32, #tpu.memory_space<vmem>>, vector<1x128xf32>
      %35 = vector.broadcast %34 : vector<1x128xf32> to vector<128x128xf32>
      %36 = arith.addf %33, %35 : vector<128x128xf32>
      %c0_32 = arith.constant 0 : index
      %c0_33 = arith.constant 0 : index
      %37 = vector.load %arg10[%c0_32, %c0_33] : memref<128x128xf32, #tpu.memory_space<vmem>>, vector<128x128xf32>
      tpu.vector_store %arg10[%c0_32, %c0_33], %36 {strides = array<i32>} : memref<128x128xf32, #tpu.memory_space<vmem>>, vector<128x128xf32>,
    } else {
    }
    return
  }
  func.func @transform_0(%arg0: i32, %arg1: i32) -> (i32, i32, i32) {
    %c0_i32 = arith.constant 0 : i32
    %c0_i32_0 = arith.constant 0 : i32
    %c0_i32_1 = arith.constant 0 : i32
    return %c0_i32, %arg1, %c0_i32_0 : i32, i32, i32
  }
  func.func @transform_1(%arg0: i32, %arg1: i32) -> (i32, i32) {
    %c0_i32 = arith.constant 0 : i32
    %c0_i32_0 = arith.constant 0 : i32
    return %arg0, %c0_i32 : i32, i32
  }
  func.func @transform_2(%arg0: i32, %arg1: i32) -> (i32, i32) {
    %c0_i32 = arith.constant 0 : i32
    return %arg0, %arg1 : i32, i32
  }
  func.func @transform_3(%arg0: i32, %arg1: i32) -> (i32, i32) {
    %c0_i32 = arith.constant 0 : i32
    return %arg0, %arg1 : i32, i32
  }
  func.func @transform_4(%arg0: i32, %arg1: i32) -> (i32, i32) {
    %c0_i32 = arith.constant 0 : i32
    return %arg0, %arg1 : i32, i32
  }
  func.func @transform_5(%arg0: i32, %arg1: i32) -> (i32, i32) {
    %c0_i32 = arith.constant 0 : i32
    %c0_i32_0 = arith.constant 0 : i32
    %c0_i32_1 = arith.constant 0 : i32
    return %c0_i32, %c0_i32_0 : i32, i32
  }
  func.func @transform_6(%arg0: i32, %arg1: i32) -> (i32, i32) {
    %c0_i32 = arith.constant 0 : i32
    %c0_i32_0 = arith.constant 0 : i32
    %c0_i32_1 = arith.constant 0 : i32
    return %c0_i32, %c0_i32_0 : i32, i32
  }
  func.func @transform_7(%arg0: i32, %arg1: i32) -> (i32, i32) {
    %c0_i32 = arith.constant 0 : i32
    %c0_i32_0 = arith.constant 0 : i32
    %c0_i32_1 = arith.constant 0 : i32
    return %c0_i32, %c0_i32_0 : i32, i32
  }
  func.func @transform_8(%arg0: i32, %arg1: i32) -> (i32, i32) {
    %c0_i32 = arith.constant 0 : i32
    %c0_i32_0 = arith.constant 0 : i32
    return %arg0, %c0_i32 : i32, i32
  }
}

</mosaic_0001>

<llo_original>
// kernel: subgraph_gnn.1
$region0: #{subgraph_gnn.1}
  #allocation0 [shape = 'u32[]', space=smem, size = 0x4, offset = 0x4, fixed_abs, tag = 'smem constant byte address 0x4 - core index']
  #allocation1 [shape = 'u32[72,128]{1,0:T(1,128)}', space=vmem, size = 0x9000, scoped, tag = 'internal scratch']
  #allocation2 [shape = 'f32[128,128]{1,0:T(8,128)}', space=vmem, size = 0x10000, scoped, tag = 'scratch operand']
  %s0 = inlined_call_operand.vmem [shape: bf16[3,128,32], index: 0, kind: input, shape index: {}]
  %s1 = inlined_call_operand.vmem [shape: f32[128,32], index: 1, kind: input, shape index: {}]
  %s2 = inlined_call_operand.vmem [shape: s8[128,128], index: 2, kind: input, shape index: {}]
  %s3 = inlined_call_operand.vmem [shape: s8[128,128], index: 3, kind: input, shape index: {}]
  %s4 = inlined_call_operand.vmem [shape: s8[128,128], index: 4, kind: input, shape index: {}]
  %s5 = inlined_call_operand.vmem [shape: f32[1,128], index: 5, kind: input, shape index: {}]
  %s6 = inlined_call_operand.vmem [shape: f32[128,128], index: 6, kind: input, shape index: {}]
  %s7 = inlined_call_operand.vmem [shape: f32[1,128], index: 7, kind: input, shape index: {}]
  %s8 = inlined_call_operand.vmem [shape: f32[128,128], index: 8, kind: output, shape index: {}]
  %s9 = sld [smem:[#allocation0]]
  $region50: #{subgraph_gnn.1} parent=0
    _
  %s11 = ssub.s32 1, %s9
  %s12 = scalar_select 0, %s11, %s9
  // Predicated region
  $region2: #{subgraph_gnn.1} parent=0 // pred_check
    _
  $region3: #{subgraph_gnn.1} parent=0 // pred_check_branch
    %14 = sbr.rel (0) target = $region5
  $region4: #{subgraph_gnn.1} parent=0 // pred_region
    _
  $region5: #{subgraph_gnn.1} parent=0 // pred_fallthru
    _
  // Predicated region
  $region6: #{subgraph_gnn.1} parent=0 // pred_check
    _
  $region7: #{subgraph_gnn.1} parent=0 // pred_check_branch
    %16 = sbr.rel (0) target = $region9
  $region8: #{subgraph_gnn.1} parent=0 // pred_region
    _
  $region9: #{subgraph_gnn.1} parent=0 // pred_fallthru
    _
  // Predicated region
  $region10: #{subgraph_gnn.1} parent=0 // pred_check
    _
  $region11: #{subgraph_gnn.1} parent=0 // pred_check_branch
    %18 = sbr.rel (0) target = $region13
  $region12: #{subgraph_gnn.1} parent=0 // pred_region
    _
  $region13: #{subgraph_gnn.1} parent=0 // pred_fallthru
    _
  // Predicated region
  $region14: #{subgraph_gnn.1} parent=0 // pred_check
    _
  $region15: #{subgraph_gnn.1} parent=0 // pred_check_branch
    %20 = sbr.rel (0) target = $region17
  $region16: #{subgraph_gnn.1} parent=0 // pred_region
    _
  $region17: #{subgraph_gnn.1} parent=0 // pred_fallthru
    _
  // Predicated region
  $region18: #{subgraph_gnn.1} parent=0 // pred_check
    _
  $region19: #{subgraph_gnn.1} parent=0 // pred_check_branch
    %22 = sbr.rel (0) target = $region21
  $region20: #{subgraph_gnn.1} parent=0 // pred_region
    _
  $region21: #{subgraph_gnn.1} parent=0 // pred_fallthru
    _
  // Predicated region
  $region22: #{subgraph_gnn.1} parent=0 // pred_check
    _
  $region23: #{subgraph_gnn.1} parent=0 // pred_check_branch
    %24 = sbr.rel (0) target = $region25
  $region24: #{subgraph_gnn.1} parent=0 // pred_region
    _
  $region25: #{subgraph_gnn.1} parent=0 // pred_fallthru
    _
  // Predicated region
  $region26: #{subgraph_gnn.1} parent=0 // pred_check
    _
  $region27: #{subgraph_gnn.1} parent=0 // pred_check_branch
    %26 = sbr.rel (0) target = $region29
  $region28: #{subgraph_gnn.1} parent=0 // pred_region
    _
  $region29: #{subgraph_gnn.1} parent=0 // pred_fallthru
    _
  // Predicated region
  $region30: #{subgraph_gnn.1} parent=0 // pred_check
    _
  $region31: #{subgraph_gnn.1} parent=0 // pred_check_branch
    %28 = sbr.rel (0) target = $region33
  $region32: #{subgraph_gnn.1} parent=0 // pred_region
    _
  $region33: #{subgraph_gnn.1} parent=0 // pred_fallthru
    _
  %p29 = scmp.eq.s32.totalorder 0, 0
  // Predicated region
  $region34: #{subgraph_gnn.1} parent=0 // pred_check
    %p30 = pneg %p29
  $region35: #{subgraph_gnn.1} parent=0 // pred_check_branch
    %32 = sbr.rel (%p30) target = $region37
  $region36: #{subgraph_gnn.1} parent=0 // pred_region
    %v33 = vld [vmem:[%s1] sm:$0xff]
    %v34 = vld [vmem:[%s1 + $0x8] sm:$0xff]
    %v35 = vld [vmem:[%s1 + $0x10] sm:$0xff]
    %v36 = vld [vmem:[%s1 + $0x18] sm:$0xff]
    %v37 = vld [vmem:[%s1 + $0x20] sm:$0xff]
    %v38 = vld [vmem:[%s1 + $0x28] sm:$0xff]
    %v39 = vld [vmem:[%s1 + $0x30] sm:$0xff]
    %v40 = vld [vmem:[%s1 + $0x38] sm:$0xff]
    %v41 = vld [vmem:[%s1 + $0x40] sm:$0xff]
    %v42 = vld [vmem:[%s1 + $0x48] sm:$0xff]
    %v43 = vld [vmem:[%s1 + $0x50] sm:$0xff]
    %v44 = vld [vmem:[%s1 + $0x58] sm:$0xff]
    %v45 = vld [vmem:[%s1 + $0x60] sm:$0xff]
    %v46 = vld [vmem:[%s1 + $0x68] sm:$0xff]
    %v47 = vld [vmem:[%s1 + $0x70] sm:$0xff]
    %v48 = vld [vmem:[%s1 + $0x78] sm:$0xff]
    %vm49 = vcmask 261120
    %v50 = vsel %vm49, %v33, 0.0
    %v51 = vsel %vm49, %v34, 0.0
    %v52 = vsel %vm49, %v35, 0.0
    %v53 = vsel %vm49, %v36, 0.0
    %v54 = vsel %vm49, %v37, 0.0
    %v55 = vsel %vm49, %v38, 0.0
    %v56 = vsel %vm49, %v39, 0.0
    %v57 = vsel %vm49, %v40, 0.0
    %v58 = vsel %vm49, %v41, 0.0
    %v59 = vsel %vm49, %v42, 0.0
    %v60 = vsel %vm49, %v43, 0.0
    %v61 = vsel %vm49, %v44, 0.0
    %v62 = vsel %vm49, %v45, 0.0
    %v63 = vsel %vm49, %v46, 0.0
    %v64 = vsel %vm49, %v47, 0.0
    %v65 = vsel %vm49, %v48, 0.0
    %66 = vst [vmem:[#allocation2] sm:$0xff] %v50
    %67 = vst [vmem:[#allocation2 + $0x8] sm:$0xff] %v51
    %68 = vst [vmem:[#allocation2 + $0x10] sm:$0xff] %v52
    %69 = vst [vmem:[#allocation2 + $0x18] sm:$0xff] %v53
    %70 = vst [vmem:[#allocation2 + $0x20] sm:$0xff] %v54
    %71 = vst [vmem:[#allocation2 + $0x28] sm:$0xff] %v55
    %72 = vst [vmem:[#allocation2 + $0x30] sm:$0xff] %v56
    %73 = vst [vmem:[#allocation2 + $0x38] sm:$0xff] %v57
    %74 = vst [vmem:[#allocation2 + $0x40] sm:$0xff] %v58
    %75 = vst [vmem:[#allocation2 + $0x48] sm:$0xff] %v59
    %76 = vst [vmem:[#allocation2 + $0x50] sm:$0xff] %v60
    %77 = vst [vmem:[#allocation2 + $0x58] sm:$0xff] %v61
    %78 = vst [vmem:[#allocation2 + $0x60] sm:$0xff] %v62
    %79 = vst [vmem:[#allocation2 + $0x68] sm:$0xff] %v63
    %80 = vst [vmem:[#allocation2 + $0x70] sm:$0xff] %v64
    %81 = vst [vmem:[#allocation2 + $0x78] sm:$0xff] %v65
  $region37: #{subgraph_gnn.1} parent=0 // pred_fallthru
    _
  %v82 = vld [vmem:[%s2] sm:$0xff]
  %v83 = vld [vmem:[%s2 + $0x8] sm:$0xff]
  %v84 = vld [vmem:[%s2 + $0x10] sm:$0xff]
  %v85 = vld [vmem:[%s2 + $0x18] sm:$0xff]
  %v86 = vunpack.c.0.s8 %v82
  %v87 = vunpack.c.1.s8 %v82
  %v88 = vunpack.c.2.s8 %v82
  %v89 = vunpack.c.3.s8 %v82
  %v90 = vunpack.c.0.s8 %v83
  %v91 = vunpack.c.1.s8 %v83
  %v92 = vunpack.c.2.s8 %v83
  %v93 = vunpack.c.3.s8 %v83
  %v94 = vunpack.c.0.s8 %v84
  %v95 = vunpack.c.1.s8 %v84
  %v96 = vunpack.c.2.s8 %v84
  %v97 = vunpack.c.3.s8 %v84
  %v98 = vunpack.c.0.s8 %v85
  %v99 = vunpack.c.1.s8 %v85
  %v100 = vunpack.c.2.s8 %v85
  %v101 = vunpack.c.3.s8 %v85
  %v102 = vcvt.s32.f32 %v86
  %v103 = vcvt.s32.f32 %v87
  %v104 = vcvt.s32.f32 %v88
  %v105 = vcvt.s32.f32 %v89
  %v106 = vcvt.s32.f32 %v90
  %v107 = vcvt.s32.f32 %v91
  %v108 = vcvt.s32.f32 %v92
  %v109 = vcvt.s32.f32 %v93
  %v110 = vcvt.s32.f32 %v94
  %v111 = vcvt.s32.f32 %v95
  %v112 = vcvt.s32.f32 %v96
  %v113 = vcvt.s32.f32 %v97
  %v114 = vcvt.s32.f32 %v98
  %v115 = vcvt.s32.f32 %v99
  %v116 = vcvt.s32.f32 %v100
  %v117 = vcvt.s32.f32 %v101
  %v118 = vpack.c.bf16 %v103, %v102
  %v119 = vpack.c.bf16 %v105, %v104
  %v120 = vpack.c.bf16 %v107, %v106
  %v121 = vpack.c.bf16 %v109, %v108
  %v122 = vpack.c.bf16 %v111, %v110
  %v123 = vpack.c.bf16 %v113, %v112
  %v124 = vpack.c.bf16 %v115, %v114
  %v125 = vpack.c.bf16 %v117, %v116
  %v126 = vld [vmem:[%s0] sm:$0xf]
  %v127 = vld [vmem:[%s0 + $0x4] sm:$0xf]
  %v128 = vld [vmem:[%s0 + $0x8] sm:$0xf]
  %v129 = vld [vmem:[%s0 + $0xc] sm:$0xf]
  %v130 = vld [vmem:[%s0 + $0x10] sm:$0xf]
  %v131 = vld [vmem:[%s0 + $0x14] sm:$0xf]
  %v132 = vld [vmem:[%s0 + $0x18] sm:$0xf]
  %v133 = vld [vmem:[%s0 + $0x1c] sm:$0xf]
  %v134 = vld [vmem:[%s0 + $0x20] sm:$0xf]
  %v135 = vld [vmem:[%s0 + $0x24] sm:$0xf]
  %v136 = vld [vmem:[%s0 + $0x28] sm:$0xf]
  %v137 = vld [vmem:[%s0 + $0x2c] sm:$0xf]
  %v138 = vld [vmem:[%s0 + $0x30] sm:$0xf]
  %v139 = vld [vmem:[%s0 + $0x34] sm:$0xf]
  %v140 = vld [vmem:[%s0 + $0x38] sm:$0xf]
  %v141 = vld [vmem:[%s0 + $0x3c] sm:$0xf]
  %v158 = vunpack.c.l.b16 %v126
  %v159 = vunpack.c.l.b16 %v127
  %v160 = vunpack.c.l.b16 %v128
  %v161 = vunpack.c.l.b16 %v129
  %v162 = vunpack.c.l.b16 %v130
  %v163 = vunpack.c.l.b16 %v131
  %v164 = vunpack.c.l.b16 %v132
  %v165 = vunpack.c.l.b16 %v133
  %v166 = vunpack.c.l.b16 %v134
  %v167 = vunpack.c.l.b16 %v135
  %v168 = vunpack.c.l.b16 %v136
  %v169 = vunpack.c.l.b16 %v137
  %v170 = vunpack.c.l.b16 %v138
  %v171 = vunpack.c.l.b16 %v139
  %v172 = vunpack.c.l.b16 %v140
  %v173 = vunpack.c.l.b16 %v141
  %v174 = vpack.c.b16 %v159, %v158
  %v175 = vpack.c.b16 %v161, %v160
  %v176 = vpack.c.b16 %v163, %v162
  %v177 = vpack.c.b16 %v165, %v164
  %v178 = vpack.c.b16 %v167, %v166
  %v179 = vpack.c.b16 %v169, %v168
  %v180 = vpack.c.b16 %v171, %v170
  %v181 = vpack.c.b16 %v173, %v172
  %190 = vmatpush.bf16.msra.mxu0 %v181
  %191 = vmatpush.bf16.msra.mxu0 %v180
  %192 = vmatpush.bf16.msra.mxu0 %v179
  %193 = vmatpush.bf16.msra.mxu0 %v178
  %194 = vmatpush.bf16.msra.mxu0 %v177
  %195 = vmatpush.bf16.msra.mxu0 %v176
  %196 = vmatpush.bf16.msra.mxu0 %v175
  %197 = vmatpush.bf16.msra.mxu0 %v174
  %198 = vmatmul.bf16.gmra.mxu0 %v118
  %v199 = vpop.f32.mrf.mxu0
  %v200 = vadd.f32 0.0, %v199
  %v201 = vpop.f32.mrf.mxu0
  %v202 = vadd.f32 0.0, %v201
  %203 = vmatmul.bf16.gmra.mxu0 %v119
  %v204 = vpop.f32.mrf.mxu0
  %v205 = vadd.f32 0.0, %v204
  %v206 = vpop.f32.mrf.mxu0
  %v207 = vadd.f32 0.0, %v206
  %208 = vmatmul.bf16.gmra.mxu0 %v120
  %v209 = vpop.f32.mrf.mxu0
  %v210 = vadd.f32 0.0, %v209
  %v211 = vpop.f32.mrf.mxu0
  %v212 = vadd.f32 0.0, %v211
  %213 = vmatmul.bf16.gmra.mxu0 %v121
  %v214 = vpop.f32.mrf.mxu0
  %v215 = vadd.f32 0.0, %v214
  %v216 = vpop.f32.mrf.mxu0
  %v217 = vadd.f32 0.0, %v216
  %218 = vmatmul.bf16.gmra.mxu0 %v122
  %v219 = vpop.f32.mrf.mxu0
  %v220 = vadd.f32 0.0, %v219
  %v221 = vpop.f32.mrf.mxu0
  %v222 = vadd.f32 0.0, %v221
  %223 = vmatmul.bf16.gmra.mxu0 %v123
  %v224 = vpop.f32.mrf.mxu0
  %v225 = vadd.f32 0.0, %v224
  %v226 = vpop.f32.mrf.mxu0
  %v227 = vadd.f32 0.0, %v226
  %228 = vmatmul.bf16.gmra.mxu0 %v124
  %v229 = vpop.f32.mrf.mxu0
  %v230 = vadd.f32 0.0, %v229
  %v231 = vpop.f32.mrf.mxu0
  %v232 = vadd.f32 0.0, %v231
  %233 = vmatmul.bf16.gmra.mxu0 %v125
  %v234 = vpop.f32.mrf.mxu0
  %v235 = vadd.f32 0.0, %v234
  %v236 = vpop.f32.mrf.mxu0
  %v237 = vadd.f32 0.0, %v236
  %238 = vdwg.mxu0
  %v239 = vld [vmem:[%s3] sm:$0xff]
  %v240 = vld [vmem:[%s3 + $0x8] sm:$0xff]
  %v241 = vld [vmem:[%s3 + $0x10] sm:$0xff]
  %v242 = vld [vmem:[%s3 + $0x18] sm:$0xff]
  %v243 = vunpack.c.0.s8 %v239
  %v244 = vunpack.c.1.s8 %v239
  %v245 = vunpack.c.2.s8 %v239
  %v246 = vunpack.c.3.s8 %v239
  %v247 = vunpack.c.0.s8 %v240
  %v248 = vunpack.c.1.s8 %v240
  %v249 = vunpack.c.2.s8 %v240
  %v250 = vunpack.c.3.s8 %v240
  %v251 = vunpack.c.0.s8 %v241
  %v252 = vunpack.c.1.s8 %v241
  %v253 = vunpack.c.2.s8 %v241
  %v254 = vunpack.c.3.s8 %v241
  %v255 = vunpack.c.0.s8 %v242
  %v256 = vunpack.c.1.s8 %v242
  %v257 = vunpack.c.2.s8 %v242
  %v258 = vunpack.c.3.s8 %v242
  %v259 = vcvt.s32.f32 %v243
  %v260 = vcvt.s32.f32 %v244
  %v261 = vcvt.s32.f32 %v245
  %v262 = vcvt.s32.f32 %v246
  %v263 = vcvt.s32.f32 %v247
  %v264 = vcvt.s32.f32 %v248
  %v265 = vcvt.s32.f32 %v249
  %v266 = vcvt.s32.f32 %v250
  %v267 = vcvt.s32.f32 %v251
  %v268 = vcvt.s32.f32 %v252
  %v269 = vcvt.s32.f32 %v253
  %v270 = vcvt.s32.f32 %v254
  %v271 = vcvt.s32.f32 %v255
  %v272 = vcvt.s32.f32 %v256
  %v273 = vcvt.s32.f32 %v257
  %v274 = vcvt.s32.f32 %v258
  %v275 = vpack.c.bf16 %v260, %v259
  %v276 = vpack.c.bf16 %v262, %v261
  %v277 = vpack.c.bf16 %v264, %v263
  %v278 = vpack.c.bf16 %v266, %v265
  %v279 = vpack.c.bf16 %v268, %v267
  %v280 = vpack.c.bf16 %v270, %v269
  %v281 = vpack.c.bf16 %v272, %v271
  %v282 = vpack.c.bf16 %v274, %v273
  %s283 = scalar_lea.vmem %s0, 64
  %v284 = vld [vmem:[%s283] sm:$0xf]
  %v285 = vld [vmem:[%s283 + $0x4] sm:$0xf]
  %v286 = vld [vmem:[%s283 + $0x8] sm:$0xf]
  %v287 = vld [vmem:[%s283 + $0xc] sm:$0xf]
  %v288 = vld [vmem:[%s283 + $0x10] sm:$0xf]
  %v289 = vld [vmem:[%s283 + $0x14] sm:$0xf]
  %v290 = vld [vmem:[%s283 + $0x18] sm:$0xf]
  %v291 = vld [vmem:[%s283 + $0x1c] sm:$0xf]
  %v292 = vld [vmem:[%s283 + $0x20] sm:$0xf]
  %v293 = vld [vmem:[%s283 + $0x24] sm:$0xf]
  %v294 = vld [vmem:[%s283 + $0x28] sm:$0xf]
  %v295 = vld [vmem:[%s283 + $0x2c] sm:$0xf]
  %v296 = vld [vmem:[%s283 + $0x30] sm:$0xf]
  %v297 = vld [vmem:[%s283 + $0x34] sm:$0xf]
  %v298 = vld [vmem:[%s283 + $0x38] sm:$0xf]
  %v299 = vld [vmem:[%s283 + $0x3c] sm:$0xf]
  %v316 = vunpack.c.l.b16 %v284
  %v317 = vunpack.c.l.b16 %v285
  %v318 = vunpack.c.l.b16 %v286
  %v319 = vunpack.c.l.b16 %v287
  %v320 = vunpack.c.l.b16 %v288
  %v321 = vunpack.c.l.b16 %v289
  %v322 = vunpack.c.l.b16 %v290
  %v323 = vunpack.c.l.b16 %v291
  %v324 = vunpack.c.l.b16 %v292
  %v325 = vunpack.c.l.b16 %v293
  %v326 = vunpack.c.l.b16 %v294
  %v327 = vunpack.c.l.b16 %v295
  %v328 = vunpack.c.l.b16 %v296
  %v329 = vunpack.c.l.b16 %v297
  %v330 = vunpack.c.l.b16 %v298
  %v331 = vunpack.c.l.b16 %v299
  %v332 = vpack.c.b16 %v317, %v316
  %v333 = vpack.c.b16 %v319, %v318
  %v334 = vpack.c.b16 %v321, %v320
  %v335 = vpack.c.b16 %v323, %v322
  %v336 = vpack.c.b16 %v325, %v324
  %v337 = vpack.c.b16 %v327, %v326
  %v338 = vpack.c.b16 %v329, %v328
  %v339 = vpack.c.b16 %v331, %v330
  %348 = vmatpush.bf16.msra.mxu0 %v339
  %349 = vmatpush.bf16.msra.mxu0 %v338
  %350 = vmatpush.bf16.msra.mxu0 %v337
  %351 = vmatpush.bf16.msra.mxu0 %v336
  %352 = vmatpush.bf16.msra.mxu0 %v335
  %353 = vmatpush.bf16.msra.mxu0 %v334
  %354 = vmatpush.bf16.msra.mxu0 %v333
  %355 = vmatpush.bf16.msra.mxu0 %v332
  %356 = vmatmul.bf16.gmra.mxu0 %v275
  %v357 = vpop.f32.mrf.mxu0
  %v358 = vadd.f32 0.0, %v357
  %v359 = vpop.f32.mrf.mxu0
  %v360 = vadd.f32 0.0, %v359
  %361 = vmatmul.bf16.gmra.mxu0 %v276
  %v362 = vpop.f32.mrf.mxu0
  %v363 = vadd.f32 0.0, %v362
  %v364 = vpop.f32.mrf.mxu0
  %v365 = vadd.f32 0.0, %v364
  %366 = vmatmul.bf16.gmra.mxu0 %v277
  %v367 = vpop.f32.mrf.mxu0
  %v368 = vadd.f32 0.0, %v367
  %v369 = vpop.f32.mrf.mxu0
  %v370 = vadd.f32 0.0, %v369
  %371 = vmatmul.bf16.gmra.mxu0 %v278
  %v372 = vpop.f32.mrf.mxu0
  %v373 = vadd.f32 0.0, %v372
  %v374 = vpop.f32.mrf.mxu0
  %v375 = vadd.f32 0.0, %v374
  %376 = vmatmul.bf16.gmra.mxu0 %v279
  %v377 = vpop.f32.mrf.mxu0
  %v378 = vadd.f32 0.0, %v377
  %v379 = vpop.f32.mrf.mxu0
  %v380 = vadd.f32 0.0, %v379
  %381 = vmatmul.bf16.gmra.mxu0 %v280
  %v382 = vpop.f32.mrf.mxu0
  %v383 = vadd.f32 0.0, %v382
  %v384 = vpop.f32.mrf.mxu0
  %v385 = vadd.f32 0.0, %v384
  %386 = vmatmul.bf16.gmra.mxu0 %v281
  %v387 = vpop.f32.mrf.mxu0
  %v388 = vadd.f32 0.0, %v387
  %v389 = vpop.f32.mrf.mxu0
  %v390 = vadd.f32 0.0, %v389
  %391 = vmatmul.bf16.gmra.mxu0 %v282
  %v392 = vpop.f32.mrf.mxu0
  %v393 = vadd.f32 0.0, %v392
  %v394 = vpop.f32.mrf.mxu0
  %v395 = vadd.f32 0.0, %v394
  %396 = vdwg.mxu0
  %v397 = vld [vmem:[%s4] sm:$0xff]
  %v398 = vld [vmem:[%s4 + $0x8] sm:$0xff]
  %v399 = vld [vmem:[%s4 + $0x10] sm:$0xff]
  %v400 = vld [vmem:[%s4 + $0x18] sm:$0xff]
  %v401 = vunpack.c.0.s8 %v397
  %v402 = vunpack.c.1.s8 %v397
  %v403 = vunpack.c.2.s8 %v397
  %v404 = vunpack.c.3.s8 %v397
  %v405 = vunpack.c.0.s8 %v398
  %v406 = vunpack.c.1.s8 %v398
  %v407 = vunpack.c.2.s8 %v398
  %v408 = vunpack.c.3.s8 %v398
  %v409 = vunpack.c.0.s8 %v399
  %v410 = vunpack.c.1.s8 %v399
  %v411 = vunpack.c.2.s8 %v399
  %v412 = vunpack.c.3.s8 %v399
  %v413 = vunpack.c.0.s8 %v400
  %v414 = vunpack.c.1.s8 %v400
  %v415 = vunpack.c.2.s8 %v400
  %v416 = vunpack.c.3.s8 %v400
  %v417 = vcvt.s32.f32 %v401
  %v418 = vcvt.s32.f32 %v402
  %v419 = vcvt.s32.f32 %v403
  %v420 = vcvt.s32.f32 %v404
  %v421 = vcvt.s32.f32 %v405
  %v422 = vcvt.s32.f32 %v406
  %v423 = vcvt.s32.f32 %v407
  %v424 = vcvt.s32.f32 %v408
  %v425 = vcvt.s32.f32 %v409
  %v426 = vcvt.s32.f32 %v410
  %v427 = vcvt.s32.f32 %v411
  %v428 = vcvt.s32.f32 %v412
  %v429 = vcvt.s32.f32 %v413
  %v430 = vcvt.s32.f32 %v414
  %v431 = vcvt.s32.f32 %v415
  %v432 = vcvt.s32.f32 %v416
  %v433 = vpack.c.bf16 %v418, %v417
  %v434 = vpack.c.bf16 %v420, %v419
  %v435 = vpack.c.bf16 %v422, %v421
  %v436 = vpack.c.bf16 %v424, %v423
  %v437 = vpack.c.bf16 %v426, %v425
  %v438 = vpack.c.bf16 %v428, %v427
  %v439 = vpack.c.bf16 %v430, %v429
  %v440 = vpack.c.bf16 %v432, %v431
  %s441 = scalar_lea.vmem %s0, 128
  %v442 = vld [vmem:[%s441] sm:$0xf]
  %v443 = vld [vmem:[%s441 + $0x4] sm:$0xf]
  %v444 = vld [vmem:[%s441 + $0x8] sm:$0xf]
  %v445 = vld [vmem:[%s441 + $0xc] sm:$0xf]
  %v446 = vld [vmem:[%s441 + $0x10] sm:$0xf]
  %v447 = vld [vmem:[%s441 + $0x14] sm:$0xf]
  %v448 = vld [vmem:[%s441 + $0x18] sm:$0xf]
  %v449 = vld [vmem:[%s441 + $0x1c] sm:$0xf]
  %v450 = vld [vmem:[%s441 + $0x20] sm:$0xf]
  %v451 = vld [vmem:[%s441 + $0x24] sm:$0xf]
  %v452 = vld [vmem:[%s441 + $0x28] sm:$0xf]
  %v453 = vld [vmem:[%s441 + $0x2c] sm:$0xf]
  %v454 = vld [vmem:[%s441 + $0x30] sm:$0xf]
  %v455 = vld [vmem:[%s441 + $0x34] sm:$0xf]
  %v456 = vld [vmem:[%s441 + $0x38] sm:$0xf]
  %v457 = vld [vmem:[%s441 + $0x3c] sm:$0xf]
  %v474 = vunpack.c.l.b16 %v442
  %v475 = vunpack.c.l.b16 %v443
  %v476 = vunpack.c.l.b16 %v444
  %v477 = vunpack.c.l.b16 %v445
  %v478 = vunpack.c.l.b16 %v446
  %v479 = vunpack.c.l.b16 %v447
  %v480 = vunpack.c.l.b16 %v448
  %v481 = vunpack.c.l.b16 %v449
  %v482 = vunpack.c.l.b16 %v450
  %v483 = vunpack.c.l.b16 %v451
  %v484 = vunpack.c.l.b16 %v452
  %v485 = vunpack.c.l.b16 %v453
  %v486 = vunpack.c.l.b16 %v454
  %v487 = vunpack.c.l.b16 %v455
  %v488 = vunpack.c.l.b16 %v456
  %v489 = vunpack.c.l.b16 %v457
  %v490 = vpack.c.b16 %v475, %v474
  %v491 = vpack.c.b16 %v477, %v476
  %v492 = vpack.c.b16 %v479, %v478
  %v493 = vpack.c.b16 %v481, %v480
  %v494 = vpack.c.b16 %v483, %v482
  %v495 = vpack.c.b16 %v485, %v484
  %v496 = vpack.c.b16 %v487, %v486
  %v497 = vpack.c.b16 %v489, %v488
  %506 = vmatpush.bf16.msra.mxu0 %v497
  %507 = vmatpush.bf16.msra.mxu0 %v496
  %508 = vmatpush.bf16.msra.mxu0 %v495
  %509 = vmatpush.bf16.msra.mxu0 %v494
  %510 = vmatpush.bf16.msra.mxu0 %v493
  %511 = vmatpush.bf16.msra.mxu0 %v492
  %512 = vmatpush.bf16.msra.mxu0 %v491
  %513 = vmatpush.bf16.msra.mxu0 %v490
  %514 = vmatmul.bf16.gmra.mxu0 %v433
  %v515 = vpop.f32.mrf.mxu0
  %v516 = vadd.f32 0.0, %v515
  %v517 = vpop.f32.mrf.mxu0
  %v518 = vadd.f32 0.0, %v517
  %519 = vmatmul.bf16.gmra.mxu0 %v434
  %v520 = vpop.f32.mrf.mxu0
  %v521 = vadd.f32 0.0, %v520
  %v522 = vpop.f32.mrf.mxu0
  %v523 = vadd.f32 0.0, %v522
  %524 = vmatmul.bf16.gmra.mxu0 %v435
  %v525 = vpop.f32.mrf.mxu0
  %v526 = vadd.f32 0.0, %v525
  %v527 = vpop.f32.mrf.mxu0
  %v528 = vadd.f32 0.0, %v527
  %529 = vmatmul.bf16.gmra.mxu0 %v436
  %v530 = vpop.f32.mrf.mxu0
  %v531 = vadd.f32 0.0, %v530
  %v532 = vpop.f32.mrf.mxu0
  %v533 = vadd.f32 0.0, %v532
  %534 = vmatmul.bf16.gmra.mxu0 %v437
  %v535 = vpop.f32.mrf.mxu0
  %v536 = vadd.f32 0.0, %v535
  %v537 = vpop.f32.mrf.mxu0
  %v538 = vadd.f32 0.0, %v537
  %539 = vmatmul.bf16.gmra.mxu0 %v438
  %v540 = vpop.f32.mrf.mxu0
  %v541 = vadd.f32 0.0, %v540
  %v542 = vpop.f32.mrf.mxu0
  %v543 = vadd.f32 0.0, %v542
  %544 = vmatmul.bf16.gmra.mxu0 %v439
  %v545 = vpop.f32.mrf.mxu0
  %v546 = vadd.f32 0.0, %v545
  %v547 = vpop.f32.mrf.mxu0
  %v548 = vadd.f32 0.0, %v547
  %549 = vmatmul.bf16.gmra.mxu0 %v440
  %v550 = vpop.f32.mrf.mxu0
  %v551 = vadd.f32 0.0, %v550
  %v552 = vpop.f32.mrf.mxu0
  %v553 = vadd.f32 0.0, %v552
  %554 = vdwg.mxu0
  %v555 = vld [vmem:[#allocation2] sm:$0xff]
  %v556 = vld [vmem:[#allocation2 + $0x8] sm:$0xff]
  %v557 = vld [vmem:[#allocation2 + $0x10] sm:$0xff]
  %v558 = vld [vmem:[#allocation2 + $0x18] sm:$0xff]
  %v559 = vld [vmem:[#allocation2 + $0x20] sm:$0xff]
  %v560 = vld [vmem:[#allocation2 + $0x28] sm:$0xff]
  %v561 = vld [vmem:[#allocation2 + $0x30] sm:$0xff]
  %v562 = vld [vmem:[#allocation2 + $0x38] sm:$0xff]
  %v563 = vld [vmem:[#allocation2 + $0x40] sm:$0xff]
  %v564 = vld [vmem:[#allocation2 + $0x48] sm:$0xff]
  %v565 = vld [vmem:[#allocation2 + $0x50] sm:$0xff]
  %v566 = vld [vmem:[#allocation2 + $0x58] sm:$0xff]
  %v567 = vld [vmem:[#allocation2 + $0x60] sm:$0xff]
  %v568 = vld [vmem:[#allocation2 + $0x68] sm:$0xff]
  %v569 = vld [vmem:[#allocation2 + $0x70] sm:$0xff]
  %v570 = vld [vmem:[#allocation2 + $0x78] sm:$0xff]
  %587 = vrot.lane.b32.xlu0 %v200, 32
  %v588 = vpop.permute.xlu0 %587
  %589 = vrot.lane.b32.xlu0 %v202, 32
  %v590 = vpop.permute.xlu0 %589
  %591 = vrot.lane.b32.xlu0 %v205, 32
  %v592 = vpop.permute.xlu0 %591
  %593 = vrot.lane.b32.xlu0 %v207, 32
  %v594 = vpop.permute.xlu0 %593
  %595 = vrot.lane.b32.xlu0 %v210, 32
  %v596 = vpop.permute.xlu0 %595
  %597 = vrot.lane.b32.xlu0 %v212, 32
  %v598 = vpop.permute.xlu0 %597
  %599 = vrot.lane.b32.xlu0 %v215, 32
  %v600 = vpop.permute.xlu0 %599
  %601 = vrot.lane.b32.xlu0 %v217, 32
  %v602 = vpop.permute.xlu0 %601
  %603 = vrot.lane.b32.xlu0 %v220, 32
  %v604 = vpop.permute.xlu0 %603
  %605 = vrot.lane.b32.xlu0 %v222, 32
  %v606 = vpop.permute.xlu0 %605
  %607 = vrot.lane.b32.xlu0 %v225, 32
  %v608 = vpop.permute.xlu0 %607
  %609 = vrot.lane.b32.xlu0 %v227, 32
  %v610 = vpop.permute.xlu0 %609
  %611 = vrot.lane.b32.xlu0 %v230, 32
  %v612 = vpop.permute.xlu0 %611
  %613 = vrot.lane.b32.xlu0 %v232, 32
  %v614 = vpop.permute.xlu0 %613
  %615 = vrot.lane.b32.xlu0 %v235, 32
  %v616 = vpop.permute.xlu0 %615
  %617 = vrot.lane.b32.xlu0 %v237, 32
  %v618 = vpop.permute.xlu0 %617
  %651 = vrot.lane.b32.xlu0 %v358, 64
  %v652 = vpop.permute.xlu0 %651
  %653 = vrot.lane.b32.xlu0 %v360, 64
  %v654 = vpop.permute.xlu0 %653
  %655 = vrot.lane.b32.xlu0 %v363, 64
  %v656 = vpop.permute.xlu0 %655
  %657 = vrot.lane.b32.xlu0 %v365, 64
  %v658 = vpop.permute.xlu0 %657
  %659 = vrot.lane.b32.xlu0 %v368, 64
  %v660 = vpop.permute.xlu0 %659
  %661 = vrot.lane.b32.xlu0 %v370, 64
  %v662 = vpop.permute.xlu0 %661
  %663 = vrot.lane.b32.xlu0 %v373, 64
  %v664 = vpop.permute.xlu0 %663
  %665 = vrot.lane.b32.xlu0 %v375, 64
  %v666 = vpop.permute.xlu0 %665
  %667 = vrot.lane.b32.xlu0 %v378, 64
  %v668 = vpop.permute.xlu0 %667
  %669 = vrot.lane.b32.xlu0 %v380, 64
  %v670 = vpop.permute.xlu0 %669
  %671 = vrot.lane.b32.xlu0 %v383, 64
  %v672 = vpop.permute.xlu0 %671
  %673 = vrot.lane.b32.xlu0 %v385, 64
  %v674 = vpop.permute.xlu0 %673
  %675 = vrot.lane.b32.xlu0 %v388, 64
  %v676 = vpop.permute.xlu0 %675
  %677 = vrot.lane.b32.xlu0 %v390, 64
  %v678 = vpop.permute.xlu0 %677
  %679 = vrot.lane.b32.xlu0 %v393, 64
  %v680 = vpop.permute.xlu0 %679
  %681 = vrot.lane.b32.xlu0 %v395, 64
  %v682 = vpop.permute.xlu0 %681
  %715 = vrot.lane.b32.xlu0 %v516, 96
  %v716 = vpop.permute.xlu0 %715
  %717 = vrot.lane.b32.xlu0 %v518, 96
  %v718 = vpop.permute.xlu0 %717
  %719 = vrot.lane.b32.xlu0 %v521, 96
  %v720 = vpop.permute.xlu0 %719
  %721 = vrot.lane.b32.xlu0 %v523, 96
  %v722 = vpop.permute.xlu0 %721
  %723 = vrot.lane.b32.xlu0 %v526, 96
  %v724 = vpop.permute.xlu0 %723
  %725 = vrot.lane.b32.xlu0 %v528, 96
  %v726 = vpop.permute.xlu0 %725
  %727 = vrot.lane.b32.xlu0 %v531, 96
  %v728 = vpop.permute.xlu0 %727
  %729 = vrot.lane.b32.xlu0 %v533, 96
  %v730 = vpop.permute.xlu0 %729
  %731 = vrot.lane.b32.xlu0 %v536, 96
  %v732 = vpop.permute.xlu0 %731
  %733 = vrot.lane.b32.xlu0 %v538, 96
  %v734 = vpop.permute.xlu0 %733
  %735 = vrot.lane.b32.xlu0 %v541, 96
  %v736 = vpop.permute.xlu0 %735
  %737 = vrot.lane.b32.xlu0 %v543, 96
  %v738 = vpop.permute.xlu0 %737
  %739 = vrot.lane.b32.xlu0 %v546, 96
  %v740 = vpop.permute.xlu0 %739
  %741 = vrot.lane.b32.xlu0 %v548, 96
  %v742 = vpop.permute.xlu0 %741
  %743 = vrot.lane.b32.xlu0 %v551, 96
  %v744 = vpop.permute.xlu0 %743
  %745 = vrot.lane.b32.xlu0 %v553, 96
  %v746 = vpop.permute.xlu0 %745
  %vm763 = vcmask 261120
  %v764 = vsel %vm763, 0.0, %v588
  %v765 = vsel %vm763, 0.0, %v590
  %v766 = vsel %vm763, 0.0, %v592
  %v767 = vsel %vm763, 0.0, %v594
  %v768 = vsel %vm763, 0.0, %v596
  %v769 = vsel %vm763, 0.0, %v598
  %v770 = vsel %vm763, 0.0, %v600
  %v771 = vsel %vm763, 0.0, %v602
  %v772 = vsel %vm763, 0.0, %v604
  %v773 = vsel %vm763, 0.0, %v606
  %v774 = vsel %vm763, 0.0, %v608
  %v775 = vsel %vm763, 0.0, %v610
  %v776 = vsel %vm763, 0.0, %v612
  %v777 = vsel %vm763, 0.0, %v614
  %v778 = vsel %vm763, 0.0, %v616
  %v779 = vsel %vm763, 0.0, %v618
  %vm780 = vcmask 523264
  %v781 = vsel %vm780, %v764, %v652
  %v782 = vsel %vm780, %v765, %v654
  %v783 = vsel %vm780, %v766, %v656
  %v784 = vsel %vm780, %v767, %v658
  %v785 = vsel %vm780, %v768, %v660
  %v786 = vsel %vm780, %v769, %v662
  %v787 = vsel %vm780, %v770, %v664
  %v788 = vsel %vm780, %v771, %v666
  %v789 = vsel %vm780, %v772, %v668
  %v790 = vsel %vm780, %v773, %v670
  %v791 = vsel %vm780, %v774, %v672
  %v792 = vsel %vm780, %v775, %v674
  %v793 = vsel %vm780, %v776, %v676
  %v794 = vsel %vm780, %v777, %v678
  %v795 = vsel %vm780, %v778, %v680
  %v796 = vsel %vm780, %v779, %v682
  %vm797 = vcmask 785408
  %v798 = vsel %vm797, %v781, %v716
  %v799 = vsel %vm797, %v782, %v718
  %v800 = vsel %vm797, %v783, %v720
  %v801 = vsel %vm797, %v784, %v722
  %v802 = vsel %vm797, %v785, %v724
  %v803 = vsel %vm797, %v786, %v726
  %v804 = vsel %vm797, %v787, %v728
  %v805 = vsel %vm797, %v788, %v730
  %v806 = vsel %vm797, %v789, %v732
  %v807 = vsel %vm797, %v790, %v734
  %v808 = vsel %vm797, %v791, %v736
  %v809 = vsel %vm797, %v792, %v738
  %v810 = vsel %vm797, %v793, %v740
  %v811 = vsel %vm797, %v794, %v742
  %v812 = vsel %vm797, %v795, %v744
  %v813 = vsel %vm797, %v796, %v746
  %v814 = vadd.f32 %v555, %v798
  %v815 = vadd.f32 %v556, %v799
  %v816 = vadd.f32 %v557, %v800
  %v817 = vadd.f32 %v558, %v801
  %v818 = vadd.f32 %v559, %v802
  %v819 = vadd.f32 %v560, %v803
  %v820 = vadd.f32 %v561, %v804
  %v821 = vadd.f32 %v562, %v805
  %v822 = vadd.f32 %v563, %v806
  %v823 = vadd.f32 %v564, %v807
  %v824 = vadd.f32 %v565, %v808
  %v825 = vadd.f32 %v566, %v809
  %v826 = vadd.f32 %v567, %v810
  %v827 = vadd.f32 %v568, %v811
  %v828 = vadd.f32 %v569, %v812
  %v829 = vadd.f32 %v570, %v813
  %830 = vst [vmem:[#allocation2] sm:$0xff] %v814
  %831 = vst [vmem:[#allocation2 + $0x8] sm:$0xff] %v815
  %832 = vst [vmem:[#allocation2 + $0x10] sm:$0xff] %v816
  %833 = vst [vmem:[#allocation2 + $0x18] sm:$0xff] %v817
  %834 = vst [vmem:[#allocation2 + $0x20] sm:$0xff] %v818
  %835 = vst [vmem:[#allocation2 + $0x28] sm:$0xff] %v819
  %836 = vst [vmem:[#allocation2 + $0x30] sm:$0xff] %v820
  %837 = vst [vmem:[#allocation2 + $0x38] sm:$0xff] %v821
  %838 = vst [vmem:[#allocation2 + $0x40] sm:$0xff] %v822
  %839 = vst [vmem:[#allocation2 + $0x48] sm:$0xff] %v823
  %840 = vst [vmem:[#allocation2 + $0x50] sm:$0xff] %v824
  %841 = vst [vmem:[#allocation2 + $0x58] sm:$0xff] %v825
  %842 = vst [vmem:[#allocation2 + $0x60] sm:$0xff] %v826
  %843 = vst [vmem:[#allocation2 + $0x68] sm:$0xff] %v827
  %844 = vst [vmem:[#allocation2 + $0x70] sm:$0xff] %v828
  %845 = vst [vmem:[#allocation2 + $0x78] sm:$0xff] %v829
  // Predicated region
  $region38: #{subgraph_gnn.1} parent=0 // pred_check
    %p846 = pneg %p29
  $region39: #{subgraph_gnn.1} parent=0 // pred_check_branch
    %848 = sbr.rel (%p846) target = $region41
  $region40: #{subgraph_gnn.1} parent=0 // pred_region
    %v849 = vld [vmem:[#allocation2] sm:$0xff]
    %v850 = vld [vmem:[#allocation2 + $0x8] sm:$0xff]
    %v851 = vld [vmem:[#allocation2 + $0x10] sm:$0xff]
    %v852 = vld [vmem:[#allocation2 + $0x18] sm:$0xff]
    %v853 = vld [vmem:[#allocation2 + $0x20] sm:$0xff]
    %v854 = vld [vmem:[#allocation2 + $0x28] sm:$0xff]
    %v855 = vld [vmem:[#allocation2 + $0x30] sm:$0xff]
    %v856 = vld [vmem:[#allocation2 + $0x38] sm:$0xff]
    %v857 = vld [vmem:[#allocation2 + $0x40] sm:$0xff]
    %v858 = vld [vmem:[#allocation2 + $0x48] sm:$0xff]
    %v859 = vld [vmem:[#allocation2 + $0x50] sm:$0xff]
    %v860 = vld [vmem:[#allocation2 + $0x58] sm:$0xff]
    %v861 = vld [vmem:[#allocation2 + $0x60] sm:$0xff]
    %v862 = vld [vmem:[#allocation2 + $0x68] sm:$0xff]
    %v863 = vld [vmem:[#allocation2 + $0x70] sm:$0xff]
    %v864 = vld [vmem:[#allocation2 + $0x78] sm:$0xff]
    %v865 = vld [vmem:[%s5] sm:$0x1]
    %v867 = vperm.slane %v865, 0
    %v869 = vadd.f32 %v849, %v867
    %v870 = vadd.f32 %v850, %v867
    %v871 = vadd.f32 %v851, %v867
    %v872 = vadd.f32 %v852, %v867
    %v873 = vadd.f32 %v853, %v867
    %v874 = vadd.f32 %v854, %v867
    %v875 = vadd.f32 %v855, %v867
    %v876 = vadd.f32 %v856, %v867
    %v877 = vadd.f32 %v857, %v867
    %v878 = vadd.f32 %v858, %v867
    %v879 = vadd.f32 %v859, %v867
    %v880 = vadd.f32 %v860, %v867
    %v881 = vadd.f32 %v861, %v867
    %v882 = vadd.f32 %v862, %v867
    %v883 = vadd.f32 %v863, %v867
    %v884 = vadd.f32 %v864, %v867
    %v885 = vmax.f32 %v869, 0.0
    %v886 = vmax.f32 %v870, 0.0
    %v887 = vmax.f32 %v871, 0.0
    %v888 = vmax.f32 %v872, 0.0
    %v889 = vmax.f32 %v873, 0.0
    %v890 = vmax.f32 %v874, 0.0
    %v891 = vmax.f32 %v875, 0.0
    %v892 = vmax.f32 %v876, 0.0
    %v893 = vmax.f32 %v877, 0.0
    %v894 = vmax.f32 %v878, 0.0
    %v895 = vmax.f32 %v879, 0.0
    %v896 = vmax.f32 %v880, 0.0
    %v897 = vmax.f32 %v881, 0.0
    %v898 = vmax.f32 %v882, 0.0
    %v899 = vmax.f32 %v883, 0.0
    %v900 = vmax.f32 %v884, 0.0
    %v901 = vld [vmem:[%s6] sm:$0xff]
    %v902 = vld [vmem:[%s6 + $0x8] sm:$0xff]
    %v903 = vld [vmem:[%s6 + $0x10] sm:$0xff]
    %v904 = vld [vmem:[%s6 + $0x18] sm:$0xff]
    %v905 = vld [vmem:[%s6 + $0x20] sm:$0xff]
    %v906 = vld [vmem:[%s6 + $0x28] sm:$0xff]
    %v907 = vld [vmem:[%s6 + $0x30] sm:$0xff]
    %v908 = vld [vmem:[%s6 + $0x38] sm:$0xff]
    %v909 = vld [vmem:[%s6 + $0x40] sm:$0xff]
    %v910 = vld [vmem:[%s6 + $0x48] sm:$0xff]
    %v911 = vld [vmem:[%s6 + $0x50] sm:$0xff]
    %v912 = vld [vmem:[%s6 + $0x58] sm:$0xff]
    %v913 = vld [vmem:[%s6 + $0x60] sm:$0xff]
    %v914 = vld [vmem:[%s6 + $0x68] sm:$0xff]
    %v915 = vld [vmem:[%s6 + $0x70] sm:$0xff]
    %v916 = vld [vmem:[%s6 + $0x78] sm:$0xff]
    %v917 = vld [vmem:[%s7] sm:$0x1]
    %v919 = vperm.slane %v917, 0
    %921 = vmatpush.msra.mxu0 %v916
    %922 = vmatpush.msra.mxu0 %v915
    %923 = vmatpush.msra.mxu0 %v914
    %924 = vmatpush.msra.mxu0 %v913
    %925 = vmatpush.msra.mxu0 %v912
    %926 = vmatpush.msra.mxu0 %v911
    %927 = vmatpush.msra.mxu0 %v910
    %928 = vmatpush.msra.mxu0 %v909
    %929 = vmatpush.msra.mxu0 %v908
    %930 = vmatpush.msra.mxu0 %v907
    %931 = vmatpush.msra.mxu0 %v906
    %932 = vmatpush.msra.mxu0 %v905
    %933 = vmatpush.msra.mxu0 %v904
    %934 = vmatpush.msra.mxu0 %v903
    %935 = vmatpush.msra.mxu0 %v902
    %936 = vmatpush.msra.mxu0 %v901
    %937 = vmatmul.f32.gmra.mxu0 %v885
    %v938 = vpop.f32.mrf.mxu0
    %v939 = vadd.f32 %v919, %v938
    %940 = vmatmul.f32.gmra.mxu0 %v886
    %v941 = vpop.f32.mrf.mxu0
    %v942 = vadd.f32 %v919, %v941
    %943 = vmatmul.f32.gmra.mxu0 %v887
    %v944 = vpop.f32.mrf.mxu0
    %v945 = vadd.f32 %v919, %v944
    %946 = vmatmul.f32.gmra.mxu0 %v888
    %v947 = vpop.f32.mrf.mxu0
    %v948 = vadd.f32 %v919, %v947
    %949 = vmatmul.f32.gmra.mxu0 %v889
    %v950 = vpop.f32.mrf.mxu0
    %v951 = vadd.f32 %v919, %v950
    %952 = vmatmul.f32.gmra.mxu0 %v890
    %v953 = vpop.f32.mrf.mxu0
    %v954 = vadd.f32 %v919, %v953
    %955 = vmatmul.f32.gmra.mxu0 %v891
    %v956 = vpop.f32.mrf.mxu0
    %v957 = vadd.f32 %v919, %v956
    %958 = vmatmul.f32.gmra.mxu0 %v892
    %v959 = vpop.f32.mrf.mxu0
    %v960 = vadd.f32 %v919, %v959
    %961 = vmatmul.f32.gmra.mxu0 %v893
    %v962 = vpop.f32.mrf.mxu0
    %v963 = vadd.f32 %v919, %v962
    %964 = vmatmul.f32.gmra.mxu0 %v894
    %v965 = vpop.f32.mrf.mxu0
    %v966 = vadd.f32 %v919, %v965
    %967 = vmatmul.f32.gmra.mxu0 %v895
    %v968 = vpop.f32.mrf.mxu0
    %v969 = vadd.f32 %v919, %v968
    %970 = vmatmul.f32.gmra.mxu0 %v896
    %v971 = vpop.f32.mrf.mxu0
    %v972 = vadd.f32 %v919, %v971
    %973 = vmatmul.f32.gmra.mxu0 %v897
    %v974 = vpop.f32.mrf.mxu0
    %v975 = vadd.f32 %v919, %v974
    %976 = vmatmul.f32.gmra.mxu0 %v898
    %v977 = vpop.f32.mrf.mxu0
    %v978 = vadd.f32 %v919, %v977
    %979 = vmatmul.f32.gmra.mxu0 %v899
    %v980 = vpop.f32.mrf.mxu0
    %v981 = vadd.f32 %v919, %v980
    %982 = vmatmul.f32.gmra.mxu0 %v900
    %v983 = vpop.f32.mrf.mxu0
    %v984 = vadd.f32 %v919, %v983
    %985 = vdwg.mxu0
    %986 = vst [vmem:[%s8] sm:$0xff] %v939
    %987 = vst [vmem:[%s8 + $0x8] sm:$0xff] %v942
    %988 = vst [vmem:[%s8 + $0x10] sm:$0xff] %v945
    %989 = vst [vmem:[%s8 + $0x18] sm:$0xff] %v948
    %990 = vst [vmem:[%s8 + $0x20] sm:$0xff] %v951
    %991 = vst [vmem:[%s8 + $0x28] sm:$0xff] %v954
    %992 = vst [vmem:[%s8 + $0x30] sm:$0xff] %v957
    %993 = vst [vmem:[%s8 + $0x38] sm:$0xff] %v960
    %994 = vst [vmem:[%s8 + $0x40] sm:$0xff] %v963
    %995 = vst [vmem:[%s8 + $0x48] sm:$0xff] %v966
    %996 = vst [vmem:[%s8 + $0x50] sm:$0xff] %v969
    %997 = vst [vmem:[%s8 + $0x58] sm:$0xff] %v972
    %998 = vst [vmem:[%s8 + $0x60] sm:$0xff] %v975
    %999 = vst [vmem:[%s8 + $0x68] sm:$0xff] %v978
    %1000 = vst [vmem:[%s8 + $0x70] sm:$0xff] %v981
    %1001 = vst [vmem:[%s8 + $0x78] sm:$0xff] %v984
  $region41: #{subgraph_gnn.1} parent=0 // pred_fallthru
    _
  // Predicated region
  $region42: #{subgraph_gnn.1} parent=0 // pred_check
    _
  $region43: #{subgraph_gnn.1} parent=0 // pred_check_branch
    %1003 = sbr.rel (0) target = $region45
  $region44: #{subgraph_gnn.1} parent=0 // pred_region
    _
  $region45: #{subgraph_gnn.1} parent=0 // pred_fallthru
    _
  // Predicated region
  $region46: #{subgraph_gnn.1} parent=0 // pred_check
    _
  $region47: #{subgraph_gnn.1} parent=0 // pred_check_branch
    %1005 = sbr.rel (0) target = $region49
  $region48: #{subgraph_gnn.1} parent=0 // pred_region
    _
  $region49: #{subgraph_gnn.1} parent=0 // pred_fallthru
    _

</llo_original>
